<compile_context>
chip_gen: v5e
topology: v5e:2x2
jax: 0.10.0
libtpu: 0.0.40
codegen_flags: <defaults>
</compile_context>

<pallas_src>
import functools
import math

import jax
import jax.numpy as jnp
import numpy as np
from jax.experimental import pallas as pl
from jax.experimental.pallas import tpu as pltpu


def _eot_grid_sample_kernel(theta_ref, xy_ref, ky_ref, kx_ref, img_ref, out_ref,
                            *, C, H, W):
    """One (theta, HW-tile) grid step of fused affine_grid + grid_sample.

    theta_ref: SMEM f32[N, 2]        [cos(a)/scale, sin(a)/scale] per transform
    xy_ref   : VMEM f32[2, T]        normalized output pixel centers (x row0, y row1)
    ky_ref   : VMEM f32[H, T]        corner-row iota (ky[r, :] == r)
    kx_ref   : VMEM f32[W, T]        corner-col iota (kx[r, :] == r)
    img_ref  : VMEM f32[C*H, W]      patch slab, row = c*H + y, col = x (resident)
    out_ref  : VMEM f32[C+1, T]      rows 0..C-1 = grid_sample(patch), row C = mask
    """
    n = pl.program_id(0)
    a = theta_ref[n, 0]          # cos(angle) / scale
    b = theta_ref[n, 1]          # sin(angle) / scale
    T = xy_ref.shape[1]

    # --- F.affine_grid (align_corners=False): theta @ [x, y, 1]^T
    x = xy_ref[0:1, :]           # (1, T)
    y = xy_ref[1:2, :]           # (1, T)
    gx = a * x + b * y
    gy = -b * x + a * y

    # --- F.grid_sample un-normalization (align_corners=False)
    ix = ((gx + 1.0) * W - 1.0) * 0.5
    iy = ((gy + 1.0) * H - 1.0) * 0.5
    ix0 = jnp.floor(ix)
    iy0 = jnp.floor(iy)
    fx = ix - ix0                # (1, T)
    fy = iy - iy0                # (1, T)

    # Broadcast once and reuse (JAX does not CSE broadcast_in_dim).
    iy0b = jnp.broadcast_to(iy0, (H, T))
    fyb = jnp.broadcast_to(fy, (H, T))
    ix0b = jnp.broadcast_to(ix0, (W, T))
    fxb = jnp.broadcast_to(fx, (W, T))

    # Factored bilinear one-hots; out-of-range corner indices match no row,
    # which is exactly zeros padding.
    ky = ky_ref[...]
    kx = kx_ref[...]
    r_y = (jnp.where(ky == iy0b, 1.0 - fyb, 0.0)
           + jnp.where(ky == iy0b + 1.0, fyb, 0.0))        # (H, T)
    r_x = (jnp.where(kx == ix0b, 1.0 - fxb, 0.0)
           + jnp.where(kx == ix0b + 1.0, fxb, 0.0))        # (W, T)

    # Column contraction on the MXU: t_cols[c*H + ky, o] = sum_kx img[c,ky,kx]*r_x[kx,o]
    t_cols = jnp.dot(img_ref[...], r_x, preferred_element_type=jnp.float32)  # (C*H, T)

    # Row contraction per channel: live temp stays (H, T), no (C, H, T) product.
    for c in range(C):
        t_c = t_cols[c * H:(c + 1) * H, :]
        out_ref[c:c + 1, :] = jnp.sum(t_c * r_y, axis=0, keepdims=True)

    # Analytic rotate-mask: grid_sample of ones == colsum(r_y) * colsum(r_x).
    # Clamp here (free VPU filler) so the wrapper needs no post-pad clamp.
    wy = jnp.sum(r_y, axis=0, keepdims=True)               # (1, T)
    wx = jnp.sum(r_x, axis=0, keepdims=True)               # (1, T)
    out_ref[C:C + 1, :] = jnp.clip(wy * wx, 0.0, 1.0)


@functools.lru_cache(maxsize=None)
def _coords_cache(H, W):
    """Theta-independent coordinate tables (hoisted out of the kernel grid)."""
    HW = H * W
    o = np.arange(HW, dtype=np.int64)
    ox = (o % W).astype(np.float64)
    oy = (o // W).astype(np.float64)
    xn = (2.0 * ox + 1.0) / W - 1.0
    yn = (2.0 * oy + 1.0) / H - 1.0
    xy = np.stack([xn, yn], axis=0).astype(np.float32)                       # (2, HW)
    ky = np.broadcast_to(np.arange(H, dtype=np.float32)[:, None], (H, HW))
    kx = np.broadcast_to(np.arange(W, dtype=np.float32)[:, None], (W, HW))
    return (jnp.asarray(xy), jnp.asarray(np.ascontiguousarray(ky)),
            jnp.asarray(np.ascontiguousarray(kx)))


def _theta_params(angle, scale_ratio):
    """Scalar glue, identical to the PyTorch scalar math (deterministic branch)."""
    pre_scale = 1.0 / (math.cos(angle) + math.sin(abs(angle)))
    scale = float(scale_ratio) * pre_scale
    # Guard scale >= 1 (the PyTorch 1 << int(-ceil(log2(scale))) would be a
    # negative shift); effective behavior is t == 1.
    t = 1 if scale >= 1.0 else (1 << int(-math.ceil(math.log2(scale))))
    if t > 1:
        # TODO(synk): F.interpolate(mode='area') downscale branch (t > 1) not
        # implemented; the chosen parameters keep scale > 0.5 so t == 1.
        raise NotImplementedError("area-downscale branch (t > 1) not implemented")
    scale = scale * t
    return (math.cos(angle) / scale, math.sin(angle) / scale), t


def eot_grid_sample_batched(patch, angles, scale_ratios, *, tile_hw=4096):
    """Fused affine_grid + grid_sample (patch + analytic rotate-mask) for N
    (angle, scale_ratio) pairs in a single pallas_call.

    Returns samples (N, C, H, W) f32 and masks (N, 1, H, W) f32 (clamped to [0,1])."""
    _, C, H, W = patch.shape
    HW = H * W
    N = len(angles)
    assert N >= 1 and len(scale_ratios) == N

    theta_rows = []
    for ang, sr in zip(angles, scale_ratios):
        (a, b), _ = _theta_params(float(ang), float(sr))
        theta_rows.append((a, b))
    theta_tbl = jnp.asarray(np.asarray(theta_rows, dtype=np.float32))        # (N, 2)

    xy, ky, kx = _coords_cache(H, W)
    img_slab = patch.reshape(C * H, W).astype(jnp.float32)                   # (C*H, W)

    if HW <= tile_hw:
        tile = HW
    else:
        tile = tile_hw
        # TODO(synk): ragged HW tiles (HW not a multiple of tile_hw) not handled.
        assert tile % 128 == 0 and HW % tile == 0

    kernel = functools.partial(_eot_grid_sample_kernel, C=C, H=H, W=W)
    out = pl.pallas_call(
        kernel,
        out_shape=jax.ShapeDtypeStruct((N, C + 1, HW), jnp.float32),
        grid_spec=pltpu.PrefetchScalarGridSpec(
            num_scalar_prefetch=1,
            grid=(N, HW // tile),
            in_specs=[
                pl.BlockSpec((2, tile), lambda n, j, th: (0, j)),      # xy
                pl.BlockSpec((H, tile), lambda n, j, th: (0, j)),      # ky
                pl.BlockSpec((W, tile), lambda n, j, th: (0, j)),      # kx
                pl.BlockSpec((C * H, W), lambda n, j, th: (0, 0)),     # patch slab (resident)
            ],
            out_specs=pl.BlockSpec((None, C + 1, tile),
                                   lambda n, j, th: (n, 0, j)),
        ),
        compiler_params=pltpu.CompilerParams(
            dimension_semantics=("parallel", "parallel"),
            vmem_limit_bytes=64 * 1024 * 1024),
    )(theta_tbl, xy, ky, kx, img_slab)

    samples = out[:, :C, :].reshape(N, C, H, W)
    masks = out[:, C, :].reshape(N, 1, H, W)
    return samples, masks


def eot_perspective_forward(patch, pos, img_shape, angle, scale_ratio):
    """Deterministic-branch equivalent of EoT_perspective.forward:
    do_random_{rotate,color,resize,perspective}=False, set_rotate=angle,
    set_resize=scale_ratio, set_perspective=None, rotate_mask=None.
    Returns (mask, padding, scale_ratio) like the PyTorch module."""
    _, C, H, W = patch.shape
    img_H, img_W = img_shape

    # TODO(synk): ColorJitter + gaussian-noise branch (do_random_color=True) not
    # implemented; this is the deterministic `img = patch.data` branch.
    # TODO(synk): tv.transforms.functional.perspective with startpoints == endpoints
    # (the deterministic branch taken here) is the identity warp, so it is a no-op;
    # a random perspective homography resample is not implemented.

    _, t = _theta_params(float(angle), float(scale_ratio))
    samples, masks = eot_grid_sample_batched(patch, [angle], [scale_ratio])
    output = samples[0:1]                                            # (1, C, H, W)
    # Mask is emitted once (row C, already clamped in-kernel) and broadcast here.
    mask = jnp.broadcast_to(masks[0:1], (1, C, H, W))

    # nn.ZeroPad2d placement into the full image canvas (t == 1 -> tw1 = th1 = 0).
    tw1 = (W - W // t) // 2
    tw2 = W - W // t - tw1
    th1 = (H - H // t) // 2
    th2 = H - H // t - th1
    pad_cfg = ((0, 0), (0, 0),
               (pos[0] + th1, img_H - H - pos[0] + th2),
               (pos[1] + tw1, img_W - W - pos[1] + tw2))
    # mask already in [0, 1]; zero padding cannot leave that range, so no re-clamp.
    mask = jnp.pad(mask, pad_cfg)
    padding = jnp.pad(output, pad_cfg)
    return mask, padding, float(scale_ratio)


def _reference_grid_sample(patch_np, angle, scale):
    """Pure-numpy reference for grid_sample(affine_grid(theta)) on the patch + ones."""
    a = math.cos(angle) / scale
    b = math.sin(angle) / scale
    _, C, H, W = patch_np.shape
    p = patch_np[0]
    out = np.zeros((C, H, W), np.float32)
    msk = np.zeros((C, H, W), np.float32)
    for i in range(H):
        for j in range(W):
            x = (2 * j + 1) / W - 1.0
            y = (2 * i + 1) / H - 1.0
            gx = a * x + b * y
            gy = -b * x + a * y
            ix = ((gx + 1) * W - 1) / 2
            iy = ((gy + 1) * H - 1) / 2
            ix0, iy0 = math.floor(ix), math.floor(iy)
            fx, fy = ix - ix0, iy - iy0
            acc = np.zeros(C, np.float32)
            wsum = 0.0
            for dy, dx, w in ((0, 0, (1 - fy) * (1 - fx)), (0, 1, (1 - fy) * fx),
                              (1, 0, fy * (1 - fx)), (1, 1, fy * fx)):
                yy, xx = iy0 + dy, ix0 + dx
                if 0 <= yy < H and 0 <= xx < W:
                    acc += np.float32(w) * p[:, yy, xx]
                    wsum += w
            out[:, i, j] = acc
            msk[:, i, j] = min(max(wsum, 0.0), 1.0)
    return out, msk


if __name__ == "__main__":
    key = jax.random.PRNGKey(0)
    H, W, C = 16, 16, 3
    img_shape = (32, 32)
    pos = (5, 7)                         # (top, left), as in LHawk.apply

    # LHawk.data = torch.rand((1, 3, H, W)) -> deterministic uniform init here
    patch = jax.random.uniform(key, (1, C, H, W), dtype=jnp.float32)
    patch_np = np.asarray(patch)

    # --- Batched path: N thetas in one pallas_call (the real-world hot loop). ---
    angles = [math.pi / 9 * 0.5, -math.pi / 11, 0.0, math.pi / 16]
    scale_ratios = [0.9, 0.95, 1.0, 0.85]
    samples, masks = eot_grid_sample_batched(patch, angles, scale_ratios)
    samples = jax.block_until_ready(samples)
    masks = jax.block_until_ready(masks)
    for i, (ang, sr) in enumerate(zip(angles, scale_ratios)):
        pre_scale = 1.0 / (math.cos(ang) + math.sin(abs(ang)))
        ref_out, ref_mask = _reference_grid_sample(patch_np, ang, sr * pre_scale)
        assert np.allclose(np.asarray(samples[i]), ref_out, atol=1e-4), f"sample {i}"
        assert np.allclose(np.asarray(masks[i, 0]), ref_mask[0], atol=1e-4), f"mask {i}"

    # --- Module-equivalent single forward (placement into the image canvas). ---
    angle, scale_ratio = angles[0], scale_ratios[0]
    mask, padding, ret_scale = eot_perspective_forward(
        patch, pos, img_shape, angle, scale_ratio)
    mask = jax.block_until_ready(mask)
    padding = jax.block_until_ready(padding)

    pre_scale = 1.0 / (math.cos(angle) + math.sin(abs(angle)))
    ref_out, ref_mask = _reference_grid_sample(patch_np, angle, scale_ratio * pre_scale)
    got_out = np.asarray(padding)[0, :, pos[0]:pos[0] + H, pos[1]:pos[1] + W]
    got_mask = np.asarray(mask)[0, :, pos[0]:pos[0] + H, pos[1]:pos[1] + W]
    assert mask.shape == (1, C) + img_shape and padding.shape == (1, C) + img_shape
    assert np.allclose(got_out, ref_out, atol=1e-4), "patch grid_sample mismatch"
    assert np.allclose(got_mask, ref_mask, atol=1e-4), "mask grid_sample mismatch"
    assert abs(ret_scale - scale_ratio) < 1e-6
    outside = np.asarray(padding).copy()
    outside[0, :, pos[0]:pos[0] + H, pos[1]:pos[1] + W] = 0
    assert np.all(outside == 0.0), "zero-pad placement mismatch"

    print("KERNEL_OK")
</pallas_src>

<mosaic_0001>
module attributes {stable_mosaic.version = 11 : i64} {
  func.func @_eot_grid_sample_kernel(%arg0: i32, %arg1: i32, %arg2: memref<4x2xf32, #tpu.memory_space<smem>>, %arg3: memref<2x256xf32, #tpu.memory_space<vmem>>, %arg4: memref<16x256xf32, #tpu.memory_space<vmem>>, %arg5: memref<16x256xf32, #tpu.memory_space<vmem>>, %arg6: memref<48x16xf32, #tpu.memory_space<vmem>>, %arg7: memref<1x4x256xf32, #tpu.memory_space<vmem>>) attributes {dimension_semantics = [#tpu.dimension_semantics<parallel>, #tpu.dimension_semantics<parallel>], iteration_bounds = array<i64: 4, 1>, scalar_prefetch = 1 : i64, scratch_operands = 0 : i64, tpu.core_type = #tpu.core_type<tc>, window_params = [{transform_indices = @transform_0, window_bounds = array<i64: 2, 256>}, {transform_indices = @transform_1, window_bounds = array<i64: 16, 256>}, {transform_indices = @transform_2, window_bounds = array<i64: 16, 256>}, {pipeline_mode = #tpu.pipeline_mode<synchronous>, transform_indices = @transform_3, window_bounds = array<i64: 48, 16>}, {transform_indices = @transform_4, window_bounds = array<i64: 1, 4, 256>}]} {
    %0 = arith.index_cast %arg0 : i32 to index
    %c0 = arith.constant 0 : index
    %1 = memref.load %arg2[%0, %c0] : memref<4x2xf32, #tpu.memory_space<smem>>
    %2 = arith.index_cast %arg0 : i32 to index
    %c1 = arith.constant 1 : index
    %3 = memref.load %arg2[%2, %c1] : memref<4x2xf32, #tpu.memory_space<smem>>
    %c0_0 = arith.constant 0 : index
    %c0_1 = arith.constant 0 : index
    %4 = vector.load %arg3[%c0_0, %c0_1] : memref<2x256xf32, #tpu.memory_space<vmem>>, vector<1x256xf32>
    %c1_2 = arith.constant 1 : index
    %c0_3 = arith.constant 0 : index
    %5 = vector.load %arg3[%c1_2, %c0_3] : memref<2x256xf32, #tpu.memory_space<vmem>>, vector<1x256xf32>
    %6 = vector.broadcast %1 : f32 to vector<1x256xf32>
    %7 = arith.mulf %6, %4 : vector<1x256xf32>
    %8 = vector.broadcast %3 : f32 to vector<1x256xf32>
    %9 = arith.mulf %8, %5 : vector<1x256xf32>
    %10 = arith.addf %7, %9 : vector<1x256xf32>
    %cst = arith.constant 0.000000e+00 : f32
    %11 = arith.subf %cst, %3 : f32
    %12 = vector.broadcast %11 : f32 to vector<1x256xf32>
    %13 = arith.mulf %12, %4 : vector<1x256xf32>
    %14 = vector.broadcast %1 : f32 to vector<1x256xf32>
    %15 = arith.mulf %14, %5 : vector<1x256xf32>
    %16 = arith.addf %13, %15 : vector<1x256xf32>
    %cst_4 = arith.constant 1.000000e+00 : f32
    %17 = vector.broadcast %cst_4 : f32 to vector<1x256xf32>
    %18 = arith.addf %10, %17 : vector<1x256xf32>
    %cst_5 = arith.constant 1.600000e+01 : f32
    %19 = vector.broadcast %cst_5 : f32 to vector<1x256xf32>
    %20 = arith.mulf %18, %19 : vector<1x256xf32>
    %cst_6 = arith.constant 1.000000e+00 : f32
    %21 = vector.broadcast %cst_6 : f32 to vector<1x256xf32>
    %22 = arith.subf %20, %21 : vector<1x256xf32>
    %cst_7 = arith.constant 5.000000e-01 : f32
    %23 = vector.broadcast %cst_7 : f32 to vector<1x256xf32>
    %24 = arith.mulf %22, %23 : vector<1x256xf32>
    %cst_8 = arith.constant 1.000000e+00 : f32
    %25 = vector.broadcast %cst_8 : f32 to vector<1x256xf32>
    %26 = arith.addf %16, %25 : vector<1x256xf32>
    %cst_9 = arith.constant 1.600000e+01 : f32
    %27 = vector.broadcast %cst_9 : f32 to vector<1x256xf32>
    %28 = arith.mulf %26, %27 : vector<1x256xf32>
    %cst_10 = arith.constant 1.000000e+00 : f32
    %29 = vector.broadcast %cst_10 : f32 to vector<1x256xf32>
    %30 = arith.subf %28, %29 : vector<1x256xf32>
    %cst_11 = arith.constant 5.000000e-01 : f32
    %31 = vector.broadcast %cst_11 : f32 to vector<1x256xf32>
    %32 = arith.mulf %30, %31 : vector<1x256xf32>
    %33 = math.floor %24 : vector<1x256xf32>
    %34 = math.floor %32 : vector<1x256xf32>
    %35 = arith.subf %24, %33 : vector<1x256xf32>
    %36 = arith.subf %32, %34 : vector<1x256xf32>
    %37 = vector.shape_cast %34 : vector<1x256xf32> to vector<1x256xf32>
    %38 = vector.broadcast %37 : vector<1x256xf32> to vector<16x256xf32>
    %39 = vector.shape_cast %36 : vector<1x256xf32> to vector<1x256xf32>
    %40 = vector.broadcast %39 : vector<1x256xf32> to vector<16x256xf32>
    %41 = vector.shape_cast %33 : vector<1x256xf32> to vector<1x256xf32>
    %42 = vector.broadcast %41 : vector<1x256xf32> to vector<16x256xf32>
    %43 = vector.shape_cast %35 : vector<1x256xf32> to vector<1x256xf32>
    %44 = vector.broadcast %43 : vector<1x256xf32> to vector<16x256xf32>
    %c0_12 = arith.constant 0 : index
    %c0_13 = arith.constant 0 : index
    %45 = vector.load %arg4[%c0_12, %c0_13] : memref<16x256xf32, #tpu.memory_space<vmem>>, vector<16x256xf32>
    %c0_14 = arith.constant 0 : index
    %c0_15 = arith.constant 0 : index
    %46 = vector.load %arg5[%c0_14, %c0_15] : memref<16x256xf32, #tpu.memory_space<vmem>>, vector<16x256xf32>
    %47 = arith.cmpf oeq, %45, %38 : vector<16x256xf32>
    %cst_16 = arith.constant 1.000000e+00 : f32
    %48 = vector.broadcast %cst_16 : f32 to vector<16x256xf32>
    %49 = arith.subf %48, %40 : vector<16x256xf32>
    %cst_17 = arith.constant 0.000000e+00 : f32
    %50 = vector.broadcast %cst_17 : f32 to vector<16x256xf32>
    %51 = arith.select %47, %49, %50 : vector<16x256xi1>, vector<16x256xf32>
    %cst_18 = arith.constant 1.000000e+00 : f32
    %52 = vector.broadcast %cst_18 : f32 to vector<16x256xf32>
    %53 = arith.addf %38, %52 : vector<16x256xf32>
    %54 = arith.cmpf oeq, %45, %53 : vector<16x256xf32>
    %cst_19 = arith.constant 0.000000e+00 : f32
    %55 = vector.broadcast %cst_19 : f32 to vector<16x256xf32>
    %56 = arith.select %54, %40, %55 : vector<16x256xi1>, vector<16x256xf32>
    %57 = arith.addf %51, %56 : vector<16x256xf32>
    %58 = arith.cmpf oeq, %46, %42 : vector<16x256xf32>
    %cst_20 = arith.constant 1.000000e+00 : f32
    %59 = vector.broadcast %cst_20 : f32 to vector<16x256xf32>
    %60 = arith.subf %59, %44 : vector<16x256xf32>
    %cst_21 = arith.constant 0.000000e+00 : f32
    %61 = vector.broadcast %cst_21 : f32 to vector<16x256xf32>
    %62 = arith.select %58, %60, %61 : vector<16x256xi1>, vector<16x256xf32>
    %cst_22 = arith.constant 1.000000e+00 : f32
    %63 = vector.broadcast %cst_22 : f32 to vector<16x256xf32>
    %64 = arith.addf %42, %63 : vector<16x256xf32>
    %65 = arith.cmpf oeq, %46, %64 : vector<16x256xf32>
    %cst_23 = arith.constant 0.000000e+00 : f32
    %66 = vector.broadcast %cst_23 : f32 to vector<16x256xf32>
    %67 = arith.select %65, %44, %66 : vector<16x256xi1>, vector<16x256xf32>
    %68 = arith.addf %62, %67 : vector<16x256xf32>
    %c0_24 = arith.constant 0 : index
    %c0_25 = arith.constant 0 : index
    %69 = vector.load %arg6[%c0_24, %c0_25] : memref<48x16xf32, #tpu.memory_space<vmem>>, vector<48x16xf32>
    %cst_26 = arith.constant dense<0.000000e+00> : vector<48x256xf32>
    %70 = tpu.matmul %69, %68, %cst_26 {dimension_numbers = #tpu.dot_dimension_numbers<[1], [0], [0], [1], [0, 0, 1, 1], [], []>} : vector<48x16xf32>, vector<16x256xf32>, vector<48x256xf32> -> vector<48x256xf32>
    %71 = vector.extract_strided_slice %70 {offsets = [0, 0], sizes = [16, 256], strides = [1, 1]} : vector<48x256xf32> to vector<16x256xf32>
    %72 = arith.mulf %71, %57 : vector<16x256xf32>
    %cst_27 = arith.constant dense<0.000000e+00> : vector<256xf32>
    %73 = vector.multi_reduction <add>, %72, %cst_27 [0] : vector<16x256xf32> to vector<256xf32>
    %74 = vector.shape_cast %73 : vector<256xf32> to vector<1x256xf32>
    %c0_28 = arith.constant 0 : index
    %c0_29 = arith.constant 0 : index
    %c0_30 = arith.constant 0 : index
    %75 = vector.load %arg7[%c0_28, %c0_29, %c0_30] : memref<1x4x256xf32, #tpu.memory_space<vmem>>, vector<1x1x256xf32>
    %76 = vector.shape_cast %75 : vector<1x1x256xf32> to vector<1x256xf32>
    %77 = vector.shape_cast %74 : vector<1x256xf32> to vector<1x1x256xf32>
    tpu.vector_store %arg7[%c0_28, %c0_29, %c0_30], %77 {strides = array<i32>} : memref<1x4x256xf32, #tpu.memory_space<vmem>>, vector<1x1x256xf32>,
    %78 = vector.extract_strided_slice %70 {offsets = [16, 0], sizes = [16, 256], strides = [1, 1]} : vector<48x256xf32> to vector<16x256xf32>
    %79 = arith.mulf %78, %57 : vector<16x256xf32>
    %cst_31 = arith.constant dense<0.000000e+00> : vector<256xf32>
    %80 = vector.multi_reduction <add>, %79, %cst_31 [0] : vector<16x256xf32> to vector<256xf32>
    %81 = vector.shape_cast %80 : vector<256xf32> to vector<1x256xf32>
    %c0_32 = arith.constant 0 : index
    %c1_33 = arith.constant 1 : index
    %c0_34 = arith.constant 0 : index
    %82 = vector.load %arg7[%c0_32, %c1_33, %c0_34] : memref<1x4x256xf32, #tpu.memory_space<vmem>>, vector<1x1x256xf32>
    %83 = vector.shape_cast %82 : vector<1x1x256xf32> to vector<1x256xf32>
    %84 = vector.shape_cast %81 : vector<1x256xf32> to vector<1x1x256xf32>
    tpu.vector_store %arg7[%c0_32, %c1_33, %c0_34], %84 {strides = array<i32>} : memref<1x4x256xf32, #tpu.memory_space<vmem>>, vector<1x1x256xf32>,
    %85 = vector.extract_strided_slice %70 {offsets = [32, 0], sizes = [16, 256], strides = [1, 1]} : vector<48x256xf32> to vector<16x256xf32>
    %86 = arith.mulf %85, %57 : vector<16x256xf32>
    %cst_35 = arith.constant dense<0.000000e+00> : vector<256xf32>
    %87 = vector.multi_reduction <add>, %86, %cst_35 [0] : vector<16x256xf32> to vector<256xf32>
    %88 = vector.shape_cast %87 : vector<256xf32> to vector<1x256xf32>
    %c0_36 = arith.constant 0 : index
    %c2 = arith.constant 2 : index
    %c0_37 = arith.constant 0 : index
    %89 = vector.load %arg7[%c0_36, %c2, %c0_37] : memref<1x4x256xf32, #tpu.memory_space<vmem>>, vector<1x1x256xf32>
    %90 = vector.shape_cast %89 : vector<1x1x256xf32> to vector<1x256xf32>
    %91 = vector.shape_cast %88 : vector<1x256xf32> to vector<1x1x256xf32>
    tpu.vector_store %arg7[%c0_36, %c2, %c0_37], %91 {strides = array<i32>} : memref<1x4x256xf32, #tpu.memory_space<vmem>>, vector<1x1x256xf32>,
    %cst_38 = arith.constant dense<0.000000e+00> : vector<256xf32>
    %92 = vector.multi_reduction <add>, %57, %cst_38 [0] : vector<16x256xf32> to vector<256xf32>
    %93 = vector.shape_cast %92 : vector<256xf32> to vector<1x256xf32>
    %cst_39 = arith.constant dense<0.000000e+00> : vector<256xf32>
    %94 = vector.multi_reduction <add>, %68, %cst_39 [0] : vector<16x256xf32> to vector<256xf32>
    %95 = vector.shape_cast %94 : vector<256xf32> to vector<1x256xf32>
    %96 = arith.mulf %93, %95 : vector<1x256xf32>
    %cst_40 = arith.constant 0.000000e+00 : f32
    %cst_41 = arith.constant 1.000000e+00 : f32
    %97 = vector.broadcast %cst_40 : f32 to vector<1x256xf32>
    %98 = arith.maximumf %97, %96 : vector<1x256xf32>
    %99 = vector.broadcast %cst_41 : f32 to vector<1x256xf32>
    %100 = arith.minimumf %99, %98 : vector<1x256xf32>
    %c0_42 = arith.constant 0 : index
    %c3 = arith.constant 3 : index
    %c0_43 = arith.constant 0 : index
    %101 = vector.load %arg7[%c0_42, %c3, %c0_43] : memref<1x4x256xf32, #tpu.memory_space<vmem>>, vector<1x1x256xf32>
    %102 = vector.shape_cast %101 : vector<1x1x256xf32> to vector<1x256xf32>
    %103 = vector.shape_cast %100 : vector<1x256xf32> to vector<1x1x256xf32>
    tpu.vector_store %arg7[%c0_42, %c3, %c0_43], %103 {strides = array<i32>} : memref<1x4x256xf32, #tpu.memory_space<vmem>>, vector<1x1x256xf32>,
    return
  }
  func.func @transform_0(%arg0: i32, %arg1: i32, %arg2: memref<4x2xf32, #tpu.memory_space<smem>>) -> (i32, i32) {
    %c0_i32 = arith.constant 0 : i32
    %c0_i32_0 = arith.constant 0 : i32
    return %c0_i32, %arg1 : i32, i32
  }
  func.func @transform_1(%arg0: i32, %arg1: i32, %arg2: memref<4x2xf32, #tpu.memory_space<smem>>) -> (i32, i32) {
    %c0_i32 = arith.constant 0 : i32
    %c0_i32_0 = arith.constant 0 : i32
    return %c0_i32, %arg1 : i32, i32
  }
  func.func @transform_2(%arg0: i32, %arg1: i32, %arg2: memref<4x2xf32, #tpu.memory_space<smem>>) -> (i32, i32) {
    %c0_i32 = arith.constant 0 : i32
    %c0_i32_0 = arith.constant 0 : i32
    return %c0_i32, %arg1 : i32, i32
  }
  func.func @transform_3(%arg0: i32, %arg1: i32, %arg2: memref<4x2xf32, #tpu.memory_space<smem>>) -> (i32, i32) {
    %c0_i32 = arith.constant 0 : i32
    %c0_i32_0 = arith.constant 0 : i32
    %c0_i32_1 = arith.constant 0 : i32
    return %c0_i32, %c0_i32_0 : i32, i32
  }
  func.func @transform_4(%arg0: i32, %arg1: i32, %arg2: memref<4x2xf32, #tpu.memory_space<smem>>) -> (i32, i32, i32) {
    %c0_i32 = arith.constant 0 : i32
    %c0_i32_0 = arith.constant 0 : i32
    return %arg0, %c0_i32, %arg1 : i32, i32, i32
  }
}

</mosaic_0001>

<llo_original>
// kernel: tpu_custom_call.1
$region0: #{tpu_custom_call.1}
  #allocation0 [shape = 'u32[]', space=smem, size = 0x4, offset = 0x4, fixed_abs, tag = 'smem constant byte address 0x4 - core index']
  #allocation1 [shape = 'u32[72,128]{1,0:T(1,128)}', space=vmem, size = 0x9000, scoped, tag = 'internal scratch']
  #allocation2 [shape = 's32[1]{0}', space=sflag, size = 0x4, scoped, tag = 'scoped memory for tpu_custom_call.1']
  #allocation3 [shape = 'u8[2048]{0}', space=smem, size = 0x800, scoped, tag = 'prefetched SMEM operand 0']
  %s0 = inlined_call_operand.vmem [shape: f32[4,2], index: 0, kind: input, shape index: {}]
  %s1 = inlined_call_operand.vmem [shape: f32[2,256], index: 1, kind: input, shape index: {}]
  %s2 = inlined_call_operand.vmem [shape: f32[16,256], index: 2, kind: input, shape index: {}]
  %s3 = inlined_call_operand.vmem [shape: f32[16,256], index: 3, kind: input, shape index: {}]
  %s4 = inlined_call_operand.vmem [shape: f32[48,16], index: 4, kind: input, shape index: {}]
  %s5 = inlined_call_operand.hbm [shape: f32[4,4,256], index: 5, kind: output, shape index: {}]
  %s6 = sld [smem:[#allocation0]]
  $region49: #{tpu_custom_call.1} parent=0
    _
  %s8 = ssub.s32 1, %s6
  %s9 = scalar_select 0, %s8, %s6
  %s11 = sshll.u32 %s0, 4
  %s12 = int_to_ptr.vmem [resolvable:$true] %s11
  %14 = dma.vmem_to_smem %s12, 64, [#allocation3], [#allocation2]
  %16 = dma.done [#allocation2], 64
  %17 = sfence
  $region1: #{tpu_custom_call.1} parent=0
    #allocation4 [shape = 'u8[8192]{0}', space=vmem, size = 0x2000, scoped, tag = 'output window, operand 0']
    #allocation5 [shape = 's32[2]{0}', space=sflag, size = 0x8, scoped, tag = 'scoped memory for tpu_custom_call.1']
    %18 = vsyncpa [#allocation5], 0
    %s19 = scalar_lea.sflag [#allocation5], 1
    %20 = vsyncpa %s19, 0
    loop: start=0, step=1, limit=6
    $region2: #{tpu_custom_call.1} parent=1 // loop_pre_header
      _
    $region3: #{tpu_custom_call.1} parent=1 // loop_header
      %s22 = sphi 0, %s26
      %p23 = scmp.ge.s32.totalorder %s22, 6
      %s29 = sphi 0, %s41
      %s30 = sphi 0, %s37
      %s31 = sphi 0, %s29
      %s32 = sphi 0, %s30
      %s33 = sphi 0, %s31
      %s34 = sphi 0, %s32
      %s44 = sphi 0, %s46
      %s47 = sphi 0, %s44
      %s48 = sphi 0, %s47
      %s64 = sphi 0, %s48
      %s70 = sphi 0, %s72
      %s73 = sphi 0, %s70
      %s74 = sphi 0, %s73
      %s90 = sphi 0, %s74
      %s96 = sphi 0, %s98
      %s99 = sphi 0, %s96
      %s100 = sphi 0, %s99
      %s116 = sphi 0, %s100
      %s120 = sphi 0, %s120
      %s122 = sphi 0, %s120
      %s123 = sphi 0, %s122
      %s137 = sphi 0, %s123
      %s145 = sphi 0, %s147
      %s148 = sphi 0, %s145
      %s149 = sphi 0, %s148
      %s165 = sphi 0, %s149
    $region4: #{tpu_custom_call.1} parent=1 // loop_header_branch
      %25 = sbr.rel (%p23) target = $region8
    $region5: #{tpu_custom_call.1} parent=1 // loop_body
      %s27 = ssub.s32 %s22, 1
      %s28 = ssub.s32 %s22, 2
      %s35 = sadd.s32 1, %s30
      %p36 = scmp.ge.s32.totalorder %s35, 1
      %s37 = scalar_select %p36, 0, %s35
      %s38 = sadd.s32 1, %s29
      %s39 = scalar_select %p36, %s38, %s29
      %p40 = scmp.ge.s32.totalorder %s39, 4
      %s41 = scalar_select %p40, 0, %s39
      %s42 = ssub.s32 %s30, %s37
      %p43 = scmp.eq.s32.totalorder %s42, 0
      %s45 = sadd.s32 %s44, 1
      %s46 = scalar_select %p43, %s44, %s45
      %p49 = pneg %p43
      %p50 = scmp.eq.s32.totalorder %s22, 3
      %p51 = por %p49, %p50
      %p52 = scmp.ne.s32.totalorder %s44, %s47
      %p53 = scmp.eq.s32.totalorder %s22, 0
      %p54 = por %p52, %p53
      %p55 = scmp.ne.s32.totalorder %s44, %s47
      %p56 = scmp.eq.s32.totalorder %s27, 3
      %p57 = por %p55, %p56
      %p58 = scmp.ne.s32.totalorder %s47, %s48
      %p59 = scmp.eq.s32.totalorder %s27, 0
      %p60 = por %p58, %p59
      %p61 = scmp.ne.s32.totalorder %s47, %s48
      %p62 = scmp.eq.s32.totalorder %s28, 3
      %p63 = por %p61, %p62
      %p65 = scmp.ne.s32.totalorder %s48, %s64
      %p66 = scmp.eq.s32.totalorder %s28, 0
      %p67 = por %p65, %p66
      %s68 = ssub.s32 %s30, %s37
      %p69 = scmp.eq.s32.totalorder %s68, 0
      %s71 = sadd.s32 %s70, 1
      %s72 = scalar_select %p69, %s70, %s71
      %p75 = pneg %p69
      %p76 = scmp.eq.s32.totalorder %s22, 3
      %p77 = por %p75, %p76
      %p78 = scmp.ne.s32.totalorder %s70, %s73
      %p79 = scmp.eq.s32.totalorder %s22, 0
      %p80 = por %p78, %p79
      %p81 = scmp.ne.s32.totalorder %s70, %s73
      %p82 = scmp.eq.s32.totalorder %s27, 3
      %p83 = por %p81, %p82
      %p84 = scmp.ne.s32.totalorder %s73, %s74
      %p85 = scmp.eq.s32.totalorder %s27, 0
      %p86 = por %p84, %p85
      %p87 = scmp.ne.s32.totalorder %s73, %s74
      %p88 = scmp.eq.s32.totalorder %s28, 3
      %p89 = por %p87, %p88
      %p91 = scmp.ne.s32.totalorder %s74, %s90
      %p92 = scmp.eq.s32.totalorder %s28, 0
      %p93 = por %p91, %p92
      %s94 = ssub.s32 %s30, %s37
      %p95 = scmp.eq.s32.totalorder %s94, 0
      %s97 = sadd.s32 %s96, 1
      %s98 = scalar_select %p95, %s96, %s97
      %p101 = pneg %p95
      %p102 = scmp.eq.s32.totalorder %s22, 3
      %p103 = por %p101, %p102
      %p104 = scmp.ne.s32.totalorder %s96, %s99
      %p105 = scmp.eq.s32.totalorder %s22, 0
      %p106 = por %p104, %p105
      %p107 = scmp.ne.s32.totalorder %s96, %s99
      %p108 = scmp.eq.s32.totalorder %s27, 3
      %p109 = por %p107, %p108
      %p110 = scmp.ne.s32.totalorder %s99, %s100
      %p111 = scmp.eq.s32.totalorder %s27, 0
      %p112 = por %p110, %p111
      %p113 = scmp.ne.s32.totalorder %s99, %s100
      %p114 = scmp.eq.s32.totalorder %s28, 3
      %p115 = por %p113, %p114
      %p117 = scmp.ne.s32.totalorder %s100, %s116
      %p118 = scmp.eq.s32.totalorder %s28, 0
      %p119 = por %p117, %p118
      %s121 = sadd.s32 %s120, 1
      %p124 = scmp.eq.s32.totalorder %s22, 3
      %p125 = scmp.ne.s32.totalorder %s120, %s122
      %p126 = scmp.eq.s32.totalorder %s22, 0
      %p127 = por %p125, %p126
      %p128 = scmp.ne.s32.totalorder %s120, %s122
      %p129 = scmp.eq.s32.totalorder %s27, 3
      %p130 = por %p128, %p129
      %p131 = scmp.ne.s32.totalorder %s122, %s123
      %p132 = scmp.eq.s32.totalorder %s27, 0
      %p133 = por %p131, %p132
      %p134 = scmp.ne.s32.totalorder %s122, %s123
      %p135 = scmp.eq.s32.totalorder %s28, 3
      %p136 = por %p134, %p135
      %p138 = scmp.ne.s32.totalorder %s123, %s137
      %p139 = scmp.eq.s32.totalorder %s28, 0
      %p140 = por %p138, %p139
      %s141 = ssub.s32 %s29, %s41
      %s142 = ssub.s32 %s30, %s37
      %s143 = sor.u32 %s141, %s142
      %p144 = scmp.eq.s32.totalorder %s143, 0
      %s146 = sadd.s32 %s145, 1
      %s147 = scalar_select %p144, %s145, %s146
      %p150 = pneg %p144
      %p151 = scmp.eq.s32.totalorder %s22, 3
      %p152 = por %p150, %p151
      %p153 = scmp.ne.s32.totalorder %s145, %s148
      %p154 = scmp.eq.s32.totalorder %s22, 0
      %p155 = por %p153, %p154
      %p156 = scmp.ne.s32.totalorder %s145, %s148
      %p157 = scmp.eq.s32.totalorder %s27, 3
      %p158 = por %p156, %p157
      %p159 = scmp.ne.s32.totalorder %s148, %s149
      %p160 = scmp.eq.s32.totalorder %s27, 0
      %p161 = por %p159, %p160
      %p162 = scmp.ne.s32.totalorder %s148, %s149
      %p163 = scmp.eq.s32.totalorder %s28, 3
      %p164 = por %p162, %p163
      %p166 = scmp.ne.s32.totalorder %s149, %s165
      %p167 = scmp.eq.s32.totalorder %s28, 0
      %p168 = por %p166, %p167
      %p169 = scmp.le.s32.totalorder 1, %s22
      %p170 = scmp.lt.s32.totalorder %s22, 5
      %p171 = pnand %p169, %p170
      %p172 = pneg %p171
      // Predicated region
      $region9: #{tpu_custom_call.1} parent=5 // pred_check
        _
      $region10: #{tpu_custom_call.1} parent=5 // pred_check_branch
        %174 = sbr.rel (%p171) target = $region12
      $region11: #{tpu_custom_call.1} parent=5 // pred_region
        %s175 = ssub.s32 %s22, 1
        // Predicated region
        $region13: #{tpu_custom_call.1} parent=11 // pred_check
          %p176 = pneg %p60
        $region14: #{tpu_custom_call.1} parent=11 // pred_check_branch
          %178 = sbr.rel (%p176) target = $region16
        $region15: #{tpu_custom_call.1} parent=11 // pred_region
          %s179 = smul.u32 2, %s32
          %p180 = scmp.lt.s32.totalorder %s179, 1
          %s181 = scalar_select %p180, %s179, 1
          %s182 = smul.addr %s181, 2
          %s183 = scalar_lea.vmem %s1, %s182
          %s184 = smul.u32 2, %s32
        $region16: #{tpu_custom_call.1} parent=11 // pred_fallthru
          _
        // Predicated region
        $region17: #{tpu_custom_call.1} parent=11 // pred_check
          %p185 = pneg %p86
        $region18: #{tpu_custom_call.1} parent=11 // pred_check_branch
          %187 = sbr.rel (%p185) target = $region20
        $region19: #{tpu_custom_call.1} parent=11 // pred_region
          %s188 = smul.u32 2, %s32
          %p189 = scmp.lt.s32.totalorder %s188, 1
          %s190 = scalar_select %p189, %s188, 1
          %s191 = smul.addr %s190, 8
          %s192 = scalar_lea.vmem %s2, %s191
          %s193 = smul.u32 2, %s32
        $region20: #{tpu_custom_call.1} parent=11 // pred_fallthru
          _
        // Predicated region
        $region21: #{tpu_custom_call.1} parent=11 // pred_check
          %p194 = pneg %p112
        $region22: #{tpu_custom_call.1} parent=11 // pred_check_branch
          %196 = sbr.rel (%p194) target = $region24
        $region23: #{tpu_custom_call.1} parent=11 // pred_region
          %s197 = smul.u32 2, %s32
          %p198 = scmp.lt.s32.totalorder %s197, 1
          %s199 = scalar_select %p198, %s197, 1
          %s200 = smul.addr %s199, 8
          %s201 = scalar_lea.vmem %s3, %s200
          %s202 = smul.u32 2, %s32
        $region24: #{tpu_custom_call.1} parent=11 // pred_fallthru
          _
        // Predicated region
        $region25: #{tpu_custom_call.1} parent=11 // pred_check
          %p203 = pneg %p133
        $region26: #{tpu_custom_call.1} parent=11 // pred_check_branch
          %205 = sbr.rel (%p203) target = $region28
        $region27: #{tpu_custom_call.1} parent=11 // pred_region
          _
        $region28: #{tpu_custom_call.1} parent=11 // pred_fallthru
          _
      $region12: #{tpu_custom_call.1} parent=5 // pred_fallthru
        _
      %p206 = scmp.lt.s32.totalorder %s22, 4
      // Predicated region
      $region29: #{tpu_custom_call.1} parent=5 // pred_check
        %p207 = pneg %p206
      $region30: #{tpu_custom_call.1} parent=5 // pred_check_branch
        %209 = sbr.rel (%p207) target = $region32
      $region31: #{tpu_custom_call.1} parent=5 // pred_region
        _
      $region32: #{tpu_custom_call.1} parent=5 // pred_fallthru
        _
      %p210 = scmp.le.s32.totalorder 1, %s22
      %p211 = scmp.lt.s32.totalorder %s22, 5
      %p212 = pnand %p210, %p211
      %p213 = pneg %p212
      // Predicated region
      $region33: #{tpu_custom_call.1} parent=5 // pred_check
        _
      $region34: #{tpu_custom_call.1} parent=5 // pred_check_branch
        %215 = sbr.rel (%p212) target = $region36
      $region35: #{tpu_custom_call.1} parent=5 // pred_region
        %s216 = ssub.s32 %s22, 1
        %s217 = smul.u32 2, %s32
        %p218 = scmp.lt.s32.totalorder %s217, 1
        %s219 = scalar_select %p218, %s217, 1
        %s220 = smul.addr %s219, 2
        %s221 = scalar_lea.vmem %s1, %s220
        %p222 = pneg %p60
        %p223 = pneg %p57
        %s224 = smul.u32 2, %s32
        %p225 = scmp.lt.s32.totalorder %s224, 1
        %s226 = scalar_select %p225, %s224, 1
        %s227 = smul.addr %s226, 8
        %s228 = scalar_lea.vmem %s2, %s227
        %p229 = pneg %p86
        %p230 = pneg %p83
        %s231 = smul.u32 2, %s32
        %p232 = scmp.lt.s32.totalorder %s231, 1
        %s233 = scalar_select %p232, %s231, 1
        %s234 = smul.addr %s233, 8
        %s235 = scalar_lea.vmem %s3, %s234
        %p236 = pneg %p112
        %p237 = pneg %p109
        %p238 = pneg %p133
        %p239 = pneg %p130
        %p240 = pneg %p161
        %p241 = pneg %p158
        %s242 = sand.u32 %s148, 1
        %s243 = scalar_lea.sflag [#allocation5], %s242
        %s244 = sand.u32 %s148, 1
        %s245 = smul.addr %s244, 8
        %s246 = scalar_lea.vmem [#allocation4], %s245
        %s247 = smul.u32 2, %s32
        %p248 = scmp.lt.s32.totalorder %s247, 1
        %s249 = scalar_select %p248, %s247, 1
        %s250 = smul.addr %s249, 2
        %s251 = scalar_lea.vmem %s1, %s250
        %s252 = smul.u32 2, %s32
        %s253 = smul.u32 2, %s32
        %p254 = scmp.lt.s32.totalorder %s253, 1
        %s255 = scalar_select %p254, %s253, 1
        %s256 = smul.addr %s255, 8
        %s257 = scalar_lea.vmem %s2, %s256
        %s258 = smul.u32 2, %s32
        %s259 = smul.u32 2, %s32
        %p260 = scmp.lt.s32.totalorder %s259, 1
        %s261 = scalar_select %p260, %s259, 1
        %s262 = smul.addr %s261, 8
        %s263 = scalar_lea.vmem %s3, %s262
        %s264 = smul.u32 2, %s32
        %s265 = smul.u32 2, %s32
        %s266 = smul.u32 %s31, 128
        %s267 = sld [smem:[#allocation3 + %s266]]
        %s268 = sadd.s32 %s266, 1
        %s269 = sld [smem:[#allocation3 + %s268]]
        %v270 = vld [vmem:[%s251] ss:$2 sm:$0x3]
        %s271 = scalar_lea.vmem %s251, 1
        %v272 = vld [vmem:[%s271] ss:$2 sm:$0x3]
        %v273 = vstv %s267
        %v274 = vmul.f32 %v273, %v270
        %v275 = vstv %s269
        %v276 = vmul.f32 %v275, %v272
        %v277 = vadd.f32 %v274, %v276
        %s278 = ssub.f32 0.0, %s269
        %v279 = vstv %s278
        %v280 = vmul.f32 %v279, %v270
        %v281 = vmul.f32 %v273, %v272
        %v282 = vadd.f32 %v280, %v281
        %v283 = vadd.f32 %v277, 1.0
        %v284 = vmul.f32 %v283, 16.0
        %v285 = vsub.f32 %v284, 1.0
        %v286 = vmul.f32 %v285, 0.5
        %v287 = vadd.f32 %v282, 1.0
        %v288 = vmul.f32 %v287, 16.0
        %v289 = vsub.f32 %v288, 1.0
        %v290 = vmul.f32 %v289, 0.5
        %v291 = vfloor.f32 %v286
        %v292 = vfloor.f32 %v290
        %v293 = vsub.f32 %v286, %v291
        %v294 = vsub.f32 %v290, %v292
        %v296 = vperm.slane %v292, 0
        %v297 = vperm.slane %v292, 1
        %v301 = vperm.slane %v294, 0
        %v302 = vperm.slane %v294, 1
        %v306 = vperm.slane %v291, 0
        %v307 = vperm.slane %v291, 1
        %v311 = vperm.slane %v293, 0
        %v312 = vperm.slane %v293, 1
        %v315 = vld [vmem:[%s257] sm:$0xff]
        %v316 = vld [vmem:[%s257 + $0x8] sm:$0xff]
        %v317 = vld [vmem:[%s257 + $0x10] sm:$0xff]
        %v318 = vld [vmem:[%s257 + $0x18] sm:$0xff]
        %v319 = vld [vmem:[%s263] sm:$0xff]
        %v320 = vld [vmem:[%s263 + $0x8] sm:$0xff]
        %v321 = vld [vmem:[%s263 + $0x10] sm:$0xff]
        %v322 = vld [vmem:[%s263 + $0x18] sm:$0xff]
        %vm323 = vcmp.eq.f32.partialorder %v315, %v296
        %vm324 = vcmp.eq.f32.partialorder %v316, %v297
        %vm325 = vcmp.eq.f32.partialorder %v317, %v296
        %vm326 = vcmp.eq.f32.partialorder %v318, %v297
        %v327 = vsub.f32 1.0, %v301
        %v328 = vsub.f32 1.0, %v302
        %v329 = vsel %vm323, %v327, 0.0
        %v330 = vsel %vm324, %v328, 0.0
        %v331 = vsel %vm325, %v327, 0.0
        %v332 = vsel %vm326, %v328, 0.0
        %v333 = vadd.f32 %v296, 1.0
        %v334 = vadd.f32 %v297, 1.0
        %vm335 = vcmp.eq.f32.partialorder %v315, %v333
        %vm336 = vcmp.eq.f32.partialorder %v316, %v334
        %vm337 = vcmp.eq.f32.partialorder %v317, %v333
        %vm338 = vcmp.eq.f32.partialorder %v318, %v334
        %v339 = vsel %vm335, %v301, 0.0
        %v340 = vsel %vm336, %v302, 0.0
        %v341 = vsel %vm337, %v301, 0.0
        %v342 = vsel %vm338, %v302, 0.0
        %v343 = vadd.f32 %v329, %v339
        %v344 = vadd.f32 %v330, %v340
        %v345 = vadd.f32 %v331, %v341
        %v346 = vadd.f32 %v332, %v342
        %vm347 = vcmp.eq.f32.partialorder %v319, %v306
        %vm348 = vcmp.eq.f32.partialorder %v320, %v307
        %vm349 = vcmp.eq.f32.partialorder %v321, %v306
        %vm350 = vcmp.eq.f32.partialorder %v322, %v307
        %v351 = vsub.f32 1.0, %v311
        %v352 = vsub.f32 1.0, %v312
        %v353 = vsel %vm347, %v351, 0.0
        %v354 = vsel %vm348, %v352, 0.0
        %v355 = vsel %vm349, %v351, 0.0
        %v356 = vsel %vm350, %v352, 0.0
        %v357 = vadd.f32 %v306, 1.0
        %v358 = vadd.f32 %v307, 1.0
        %vm359 = vcmp.eq.f32.partialorder %v319, %v357
        %vm360 = vcmp.eq.f32.partialorder %v320, %v358
        %vm361 = vcmp.eq.f32.partialorder %v321, %v357
        %vm362 = vcmp.eq.f32.partialorder %v322, %v358
        %v363 = vsel %vm359, %v311, 0.0
        %v364 = vsel %vm360, %v312, 0.0
        %v365 = vsel %vm361, %v311, 0.0
        %v366 = vsel %vm362, %v312, 0.0
        %v367 = vadd.f32 %v353, %v363
        %v368 = vadd.f32 %v354, %v364
        %v369 = vadd.f32 %v355, %v365
        %v370 = vadd.f32 %v356, %v366
        %v371 = vld [vmem:[%s4] sm:$0xff]
        %v372 = vld [vmem:[%s4 + $0x8] sm:$0xff]
        %v373 = vld [vmem:[%s4 + $0x10] sm:$0xff]
        %v374 = vld [vmem:[%s4 + $0x18] sm:$0xff]
        %v375 = vld [vmem:[%s4 + $0x20] sm:$0xff]
        %v376 = vld [vmem:[%s4 + $0x28] sm:$0xff]
        %vm377 = vcmask 130048
        %v379 = vsel %vm377, %v371, 0
        %v382 = vsel %vm377, %v372, 0
        %v385 = vsel %vm377, %v373, 0
        %v388 = vsel %vm377, %v374, 0
        %v391 = vsel %vm377, %v375, 0
        %v394 = vsel %vm377, %v376, 0
        %396 = vmatpush.msra.mxu0 0.0
        %397 = vmatpush.msra.mxu0 0.0
        %398 = vmatpush.msra.mxu0 0.0
        %399 = vmatpush.msra.mxu0 0.0
        %400 = vmatpush.msra.mxu0 0.0
        %401 = vmatpush.msra.mxu0 0.0
        %402 = vmatpush.msra.mxu0 0.0
        %403 = vmatpush.msra.mxu0 0.0
        %404 = vmatpush.msra.mxu0 0.0
        %405 = vmatpush.msra.mxu0 0.0
        %406 = vmatpush.msra.mxu0 0.0
        %407 = vmatpush.msra.mxu0 0.0
        %408 = vmatpush.msra.mxu0 0.0
        %409 = vmatpush.msra.mxu0 0.0
        %410 = vmatpush.msra.mxu0 %v369
        %411 = vmatpush.msra.mxu0 %v367
        %412 = vmatmul.f32.gmra.mxu0 %v379
        %v413 = vpop.f32.mrf.mxu0
        %v414 = vadd.f32 0.0, %v413
        %415 = vmatmul.f32.gmra.mxu0 %v382
        %v416 = vpop.f32.mrf.mxu0
        %v417 = vadd.f32 0.0, %v416
        %418 = vmatmul.f32.gmra.mxu0 %v385
        %v419 = vpop.f32.mrf.mxu0
        %v420 = vadd.f32 0.0, %v419
        %421 = vmatmul.f32.gmra.mxu0 %v388
        %v422 = vpop.f32.mrf.mxu0
        %v423 = vadd.f32 0.0, %v422
        %424 = vmatmul.f32.gmra.mxu0 %v391
        %v425 = vpop.f32.mrf.mxu0
        %v426 = vadd.f32 0.0, %v425
        %427 = vmatmul.f32.gmra.mxu0 %v394
        %v428 = vpop.f32.mrf.mxu0
        %v429 = vadd.f32 0.0, %v428
        %430 = vdwg.mxu0
        %431 = vmatpush.msra.mxu0 0.0
        %432 = vmatpush.msra.mxu0 0.0
        %433 = vmatpush.msra.mxu0 0.0
        %434 = vmatpush.msra.mxu0 0.0
        %435 = vmatpush.msra.mxu0 0.0
        %436 = vmatpush.msra.mxu0 0.0
        %437 = vmatpush.msra.mxu0 0.0
        %438 = vmatpush.msra.mxu0 0.0
        %439 = vmatpush.msra.mxu0 0.0
        %440 = vmatpush.msra.mxu0 0.0
        %441 = vmatpush.msra.mxu0 0.0
        %442 = vmatpush.msra.mxu0 0.0
        %443 = vmatpush.msra.mxu0 0.0
        %444 = vmatpush.msra.mxu0 0.0
        %445 = vmatpush.msra.mxu0 %v370
        %446 = vmatpush.msra.mxu0 %v368
        %447 = vmatmul.f32.gmra.mxu0 %v379
        %v448 = vpop.f32.mrf.mxu0
        %v449 = vadd.f32 0.0, %v448
        %450 = vmatmul.f32.gmra.mxu0 %v382
        %v451 = vpop.f32.mrf.mxu0
        %v452 = vadd.f32 0.0, %v451
        %453 = vmatmul.f32.gmra.mxu0 %v385
        %v454 = vpop.f32.mrf.mxu0
        %v455 = vadd.f32 0.0, %v454
        %456 = vmatmul.f32.gmra.mxu0 %v388
        %v457 = vpop.f32.mrf.mxu0
        %v458 = vadd.f32 0.0, %v457
        %459 = vmatmul.f32.gmra.mxu0 %v391
        %v460 = vpop.f32.mrf.mxu0
        %v461 = vadd.f32 0.0, %v460
        %462 = vmatmul.f32.gmra.mxu0 %v394
        %v463 = vpop.f32.mrf.mxu0
        %v464 = vadd.f32 0.0, %v463
        %465 = vdwg.mxu0
        %v466 = vmul.f32 %v414, %v343
        %v467 = vmul.f32 %v449, %v344
        %v468 = vmul.f32 %v417, %v345
        %v469 = vmul.f32 %v452, %v346
        %v470 = vadd.f32 %v466, %v468
        %v471 = vrot.slane %v470, 4
        %v472 = vadd.f32 %v470, %v471
        %v473 = vrot.slane %v472, 2
        %v474 = vadd.f32 %v472, %v473
        %v475 = vrot.slane %v474, 1
        %v476 = vadd.f32 %v474, %v475
        %v477 = vadd.f32 %v467, %v469
        %v478 = vrot.slane %v477, 4
        %v479 = vadd.f32 %v477, %v478
        %v480 = vrot.slane %v479, 2
        %v481 = vadd.f32 %v479, %v480
        %v482 = vrot.slane %v481, 1
        %v483 = vadd.f32 %v481, %v482
        %v486 = vrot.slane %v483, 7
        %vm487 = vcmask 1040384
        %v488 = vsel %vm487, %v476, %v486
        %v490 = vlaneseq
        %vm491 = vcmp.ge.s32.totalorder %v490, 0
        %vm492 = vcmp.lt.s32.totalorder %v490, 256
        %vm493 = vmand %vm491, %vm492
        %494 = vst.msk [vmem:[%s246] ss:$4 sm:$0x3] %vm493, %v488
        %v495 = vmul.f32 %v420, %v343
        %v496 = vmul.f32 %v455, %v344
        %v497 = vmul.f32 %v423, %v345
        %v498 = vmul.f32 %v458, %v346
        %v499 = vadd.f32 %v495, %v497
        %v500 = vrot.slane %v499, 4
        %v501 = vadd.f32 %v499, %v500
        %v502 = vrot.slane %v501, 2
        %v503 = vadd.f32 %v501, %v502
        %v504 = vrot.slane %v503, 1
        %v505 = vadd.f32 %v503, %v504
        %v506 = vadd.f32 %v496, %v498
        %v507 = vrot.slane %v506, 4
        %v508 = vadd.f32 %v506, %v507
        %v509 = vrot.slane %v508, 2
        %v510 = vadd.f32 %v508, %v509
        %v511 = vrot.slane %v510, 1
        %v512 = vadd.f32 %v510, %v511
        %v515 = vrot.slane %v512, 7
        %v516 = vsel %vm487, %v505, %v515
        %s518 = scalar_lea.vmem %s246, 1 [#allocation4]
        %519 = vst.msk [vmem:[%s518] ss:$4 sm:$0x3] %vm493, %v516
        %v520 = vmul.f32 %v426, %v343
        %v521 = vmul.f32 %v461, %v344
        %v522 = vmul.f32 %v429, %v345
        %v523 = vmul.f32 %v464, %v346
        %v524 = vadd.f32 %v520, %v522
        %v525 = vrot.slane %v524, 4
        %v526 = vadd.f32 %v524, %v525
        %v527 = vrot.slane %v526, 2
        %v528 = vadd.f32 %v526, %v527
        %v529 = vrot.slane %v528, 1
        %v530 = vadd.f32 %v528, %v529
        %v531 = vadd.f32 %v521, %v523
        %v532 = vrot.slane %v531, 4
        %v533 = vadd.f32 %v531, %v532
        %v534 = vrot.slane %v533, 2
        %v535 = vadd.f32 %v533, %v534
        %v536 = vrot.slane %v535, 1
        %v537 = vadd.f32 %v535, %v536
        %v540 = vrot.slane %v537, 7
        %v541 = vsel %vm487, %v530, %v540
        %s543 = scalar_lea.vmem %s246, 2 [#allocation4]
        %544 = vst.msk [vmem:[%s543] ss:$4 sm:$0x3] %vm493, %v541
        %v545 = vadd.f32 %v343, %v345
        %v546 = vrot.slane %v545, 4
        %v547 = vadd.f32 %v545, %v546
        %v548 = vrot.slane %v547, 2
        %v549 = vadd.f32 %v547, %v548
        %v550 = vrot.slane %v549, 1
        %v551 = vadd.f32 %v549, %v550
        %v552 = vadd.f32 %v344, %v346
        %v553 = vrot.slane %v552, 4
        %v554 = vadd.f32 %v552, %v553
        %v555 = vrot.slane %v554, 2
        %v556 = vadd.f32 %v554, %v555
        %v557 = vrot.slane %v556, 1
        %v558 = vadd.f32 %v556, %v557
        %v559 = vadd.f32 %v367, %v369
        %v560 = vrot.slane %v559, 4
        %v561 = vadd.f32 %v559, %v560
        %v562 = vrot.slane %v561, 2
        %v563 = vadd.f32 %v561, %v562
        %v564 = vrot.slane %v563, 1
        %v565 = vadd.f32 %v563, %v564
        %v566 = vadd.f32 %v368, %v370
        %v567 = vrot.slane %v566, 4
        %v568 = vadd.f32 %v566, %v567
        %v569 = vrot.slane %v568, 2
        %v570 = vadd.f32 %v568, %v569
        %v571 = vrot.slane %v570, 1
        %v572 = vadd.f32 %v570, %v571
        %v573 = vmul.f32 %v551, %v565
        %v574 = vmul.f32 %v558, %v572
        %v575 = vmax.f32 %v573, 0.0
        %v576 = vmax.f32 %v574, 0.0
        %v577 = vmin.f32 %v575, 1.0
        %v578 = vmin.f32 %v576, 1.0
        %v581 = vrot.slane %v578, 7
        %v582 = vsel %vm487, %v577, %v581
        %s584 = scalar_lea.vmem %s246, 3 [#allocation4]
        %585 = vst.msk [vmem:[%s584] ss:$4 sm:$0x3] %vm493, %v582
        %s586 = sand.u32 %s148, 1
        %s587 = scalar_lea.sflag [#allocation5], %s586
        %s588 = sand.u32 %s148, 1
        %s589 = smul.addr %s588, 8
        %s590 = scalar_lea.vmem [#allocation4], %s589
        // Predicated region
        $region37: #{tpu_custom_call.1} parent=35 // pred_check
          %p591 = pneg %p158
        $region38: #{tpu_custom_call.1} parent=35 // pred_check_branch
          %593 = sbr.rel (%p591) target = $region40
        $region39: #{tpu_custom_call.1} parent=35 // pred_region
          %s594 = smul.u32 2, %s32
          %596 = vsyncadd %s587, 0
          %s597 = smul.addr %s31, 2
          %s598 = sadd.s32 %s594, %s597
          %s599 = smul.addr %s598, 4
          %s600 = scalar_lea.hbm %s5, %s599
          %s602 = sshll.u32 %s590, 4
          %s603 = int_to_ptr.vmem [resolvable:$true] %s602
          %s604 = sshll.u32 %s600, 4
          %s605 = int_to_ptr.hbm [resolvable:$true] %s604
          %607 = dma.vmem_to_hbm [thread:$0]  %s603, 128, %s605, %s587
        $region40: #{tpu_custom_call.1} parent=35 // pred_fallthru
          _
      $region36: #{tpu_custom_call.1} parent=5 // pred_fallthru
        _
      %p608 = scmp.le.s32.totalorder 2, %s22
      // Predicated region
      $region41: #{tpu_custom_call.1} parent=5 // pred_check
        %p609 = pneg %p608
      $region42: #{tpu_custom_call.1} parent=5 // pred_check_branch
        %611 = sbr.rel (%p609) target = $region44
      $region43: #{tpu_custom_call.1} parent=5 // pred_region
        %s612 = ssub.s32 %s22, 2
        // Predicated region
        $region45: #{tpu_custom_call.1} parent=43 // pred_check
          %p613 = pneg %p164
        $region46: #{tpu_custom_call.1} parent=43 // pred_check_branch
          %615 = sbr.rel (%p613) target = $region48
        $region47: #{tpu_custom_call.1} parent=43 // pred_region
          %s616 = sand.u32 %s149, 1
          %s617 = scalar_lea.sflag [#allocation5], %s616
          %s618 = sand.u32 %s149, 1
          %s619 = smul.addr %s618, 8
          %s620 = scalar_lea.vmem [#allocation4], %s619
          %622 = dma.done %s617, 128
        $region48: #{tpu_custom_call.1} parent=43 // pred_fallthru
          _
      $region44: #{tpu_custom_call.1} parent=5 // pred_fallthru
        _
    $region6: #{tpu_custom_call.1} parent=1 // loop_footer
      %s26 = sadd.s32 1, %s22
    $region7: #{tpu_custom_call.1} parent=1 // loop_footer_branch
      %21 = sbr.rel target = $region3
    $region8: #{tpu_custom_call.1} parent=1 // loop_exit
      _
    %623 = vsyncpa [#allocation5], 1
    %s624 = scalar_lea.sflag [#allocation5], 1
    %625 = vsyncpa %s624, 1

</llo_original>
